<compile_context>
chip_gen: v6e
topology: v6e:2x2x1
jax: 0.10.0
libtpu: 0.0.40
codegen_flags: <defaults>
</compile_context>

<pallas_src>
import functools

import jax
import jax.numpy as jnp
from jax.experimental import pallas as pl
from jax.experimental.pallas import tpu as pltpu

_LANE = 128  # lane-dense output width (vreg lane count)


def _round_up(x, m):
    return ((x + m - 1) // m) * m


# --------------------------------------------------------------------------
# Kernel
# --------------------------------------------------------------------------
def _linear_kernel(x_ref, wt_ref, b_ref, o_ref):
    # x_ref : (TB, H) bf16   wt_ref : (H, Np) bf16   b_ref : (1, Np) f32
    # o_ref : (TB, Np) f32
    acc = jnp.dot(x_ref[...], wt_ref[...], preferred_element_type=jnp.float32)
    o_ref[...] = (acc + b_ref[...]).astype(o_ref.dtype)


# --------------------------------------------------------------------------
# Generation-aware sizing
# --------------------------------------------------------------------------
def _device_profile():
    """Returns (vmem_budget_bytes, vmem_limit_bytes, is_v7x)."""
    try:
        kind = jax.devices()[0].device_kind.lower()
    except Exception:  # pragma: no cover - be conservative if query fails
        kind = ""
    if "v7" in kind or "7x" in kind:
        # v7x: 64 MiB physical VMEM / 32 MiB scoped default -> leave headroom.
        return 24 * 1024 * 1024, 32 * 1024 * 1024, True
    # v5e / v6e: 128 MiB physical VMEM; raise the scoped limit well past the
    # 16/32 MiB defaults so big batch tiles stay resident.
    return 56 * 1024 * 1024, 64 * 1024 * 1024, False


def _pick_tile(B, H, n_pad, budget_bytes, is_v7x):
    """Largest batch tile (multiple of 16 sublanes, bf16) that fits the budget."""
    # VMEM model: 2x (tb,H) bf16 x tiles + 2x (tb,n_pad) f32 out tiles
    #             + 1x (H,n_pad) bf16 weight + (1,n_pad) f32 bias.
    fixed = H * n_pad * 2 + n_pad * 4
    per_row = 2 * H * 2 + 2 * n_pad * 4
    tb = max(16, (budget_bytes - fixed) // per_row)
    tb = min(tb, 2048, _round_up(B, 16))
    tb = max(16, (tb // 16) * 16)
    if is_v7x and B >= 32:
        # Ensure >= 2 grid steps so both v7x TensorCores get a batch tile.
        tb = min(tb, _round_up(-(-B // 2), 16))
    return int(tb)


def _resident_spec(block_shape, single_buffer):
    """BlockSpec for a grid-invariant (VMEM-resident) operand."""
    index_map = lambda i: (0,) * len(block_shape)
    if single_buffer and hasattr(pl, "Buffered"):
        return pl.BlockSpec(block_shape, index_map, pipeline_mode=pl.Buffered(1))
    return pl.BlockSpec(block_shape, index_map)


# --------------------------------------------------------------------------
# Fused forward: bf16 cast -> pallas matmul -> lane-padding slice
# --------------------------------------------------------------------------
@functools.partial(
    jax.jit,
    static_argnames=("tb", "n_out", "vmem_limit", "single_buffer_weights"),
)
def _forward(x, wt, b, *, tb, n_out, vmem_limit, single_buffer_weights):
    x = x.astype(jnp.bfloat16)  # halve HBM traffic on the dominant stream
    B, H = x.shape
    Np = wt.shape[1]
    grid = (pl.cdiv(B, tb),)  # ragged last tile handled by Pallas (no pad copy)

    cost = pl.CostEstimate(
        flops=2 * B * H * Np,
        transcendentals=0,
        bytes_accessed=B * H * 2 + H * Np * 2 + Np * 4 + B * Np * 4,
    )

    out = pl.pallas_call(
        _linear_kernel,
        out_shape=jax.ShapeDtypeStruct((B, Np), jnp.float32),
        grid=grid,
        in_specs=[
            pl.BlockSpec((tb, H), lambda i: (i, 0)),          # streamed x tiles
            _resident_spec((H, Np), single_buffer_weights),   # resident weight
            _resident_spec((1, Np), single_buffer_weights),   # resident bias
        ],
        out_specs=pl.BlockSpec((tb, Np), lambda i: (i, 0)),
        compiler_params=pltpu.CompilerParams(
            dimension_semantics=("parallel",),
            vmem_limit_bytes=vmem_limit,
        ),
        cost_estimate=cost,
    )(x, wt, b)
    return out[:, :n_out]  # drop lane padding inside the same jit


# --------------------------------------------------------------------------
# Module wrapper
# --------------------------------------------------------------------------
class ClassificationHead:
    """JAX/Pallas port of MOFTransformer ClassificationHead."""

    def __init__(self, hid_dim, n_classes, key):
        if n_classes == 2:
            n_out, self.binary = 1, True
        else:
            n_out, self.binary = n_classes, False
        self.n_out = n_out
        self.hid_dim = hid_dim
        self._n_pad = _round_up(max(n_out, 1), _LANE)

        kw, kb = jax.random.split(key)
        # Deterministic init mimicking nn.Linear's uniform(-1/sqrt(H), 1/sqrt(H)).
        bound = 1.0 / (hid_dim ** 0.5)
        w = jax.random.uniform(
            kw, (hid_dim, n_out), jnp.float32, minval=-bound, maxval=bound
        )
        bvec = jax.random.uniform(
            kb, (1, n_out), jnp.float32, minval=-bound, maxval=bound
        )
        # Weight held transposed, zero-padded to 128 lanes, stored bf16
        # (MXU-native; f32 accumulation happens in-kernel).  Bias stays f32.
        self.weight_t = (
            jnp.zeros((hid_dim, self._n_pad), jnp.bfloat16)
            .at[:, :n_out]
            .set(w.astype(jnp.bfloat16))
        )
        self.bias = (
            jnp.zeros((1, self._n_pad), jnp.float32).at[:, :n_out].set(bvec)
        )

        budget, self._vmem_limit, self._is_v7x = _device_profile()
        self._budget = budget
        self._single_buf = True  # try pl.Buffered(1) for resident operands

    def __call__(self, x):
        B = x.shape[0]
        tb = _pick_tile(B, self.hid_dim, self._n_pad, self._budget, self._is_v7x)
        kwargs = dict(tb=tb, n_out=self.n_out, vmem_limit=self._vmem_limit)
        if self._single_buf:
            try:
                out = _forward(
                    x, self.weight_t, self.bias,
                    single_buffer_weights=True, **kwargs,
                )
                return (out, self.binary)
            except Exception:
                # This JAX/Mosaic build rejects single-buffered blocks; fall
                # back to default double-buffering (slightly more VMEM).
                self._single_buf = False
        out = _forward(
            x, self.weight_t, self.bias, single_buffer_weights=False, **kwargs
        )
        return (out, self.binary)


# --------------------------------------------------------------------------
# Demo / self-check
# --------------------------------------------------------------------------
if __name__ == "__main__":
    key = jax.random.PRNGKey(0)
    k_x, k_p = jax.random.split(key)

    batch, hid_dim, n_classes = 2, 32, 5  # non-binary head -> fc_out: 32 -> 5
    x = jax.random.normal(k_x, (batch, hid_dim), jnp.float32)
    x_bf = x.astype(jnp.bfloat16)

    head = ClassificationHead(hid_dim, n_classes, k_p)
    logits, binary = head(x)
    logits = jax.block_until_ready(logits)

    # Reference: same bf16 operands, f32 accumulation.
    ref = (
        jnp.dot(x_bf, head.weight_t[:, : head.n_out],
                preferred_element_type=jnp.float32)
        + head.bias[:, : head.n_out]
    )
    assert logits.shape == (batch, n_classes)
    assert binary is False
    assert jnp.allclose(logits, ref, atol=1e-4, rtol=1e-4)

    # Also exercise the binary branch (n_classes == 2 -> single output unit).
    head_bin = ClassificationHead(hid_dim, 2, k_p)
    logits_bin, binary_bin = head_bin(x)
    logits_bin = jax.block_until_ready(logits_bin)
    ref_bin = (
        jnp.dot(x_bf, head_bin.weight_t[:, :1],
                preferred_element_type=jnp.float32)
        + head_bin.bias[:, :1]
    )
    assert logits_bin.shape == (batch, 1)
    assert binary_bin is True
    assert jnp.allclose(logits_bin, ref_bin, atol=1e-4, rtol=1e-4)

    print("KERNEL_OK")
</pallas_src>

<mosaic_0001>
module attributes {stable_mosaic.version = 11 : i64} {
  func.func @_linear_kernel(%arg0: i32, %arg1: memref<16x32xbf16, #tpu.memory_space<vmem>>, %arg2: memref<32x128xbf16, #tpu.memory_space<vmem>>, %arg3: memref<1x128xf32, #tpu.memory_space<vmem>>, %arg4: memref<16x128xf32, #tpu.memory_space<vmem>>) attributes {dimension_semantics = [#tpu.dimension_semantics<parallel>], iteration_bounds = array<i64: 1>, scalar_prefetch = 0 : i64, scratch_operands = 0 : i64, tpu.core_type = #tpu.core_type<tc>, window_params = [{transform_indices = @transform_0, window_bounds = array<i64: 16, 32>}, {pipeline_mode = #tpu.pipeline_mode<synchronous>, transform_indices = @transform_1, window_bounds = array<i64: 32, 128>}, {pipeline_mode = #tpu.pipeline_mode<synchronous>, transform_indices = @transform_2, window_bounds = array<i64: 1, 128>}, {transform_indices = @transform_3, window_bounds = array<i64: 16, 128>}]} {
    %c0 = arith.constant 0 : index
    %c0_0 = arith.constant 0 : index
    %0 = vector.load %arg1[%c0, %c0_0] : memref<16x32xbf16, #tpu.memory_space<vmem>>, vector<16x32xbf16>
    %c0_1 = arith.constant 0 : index
    %c0_2 = arith.constant 0 : index
    %1 = vector.load %arg2[%c0_1, %c0_2] : memref<32x128xbf16, #tpu.memory_space<vmem>>, vector<32x128xbf16>
    %cst = arith.constant dense<0.000000e+00> : vector<16x128xf32>
    %2 = tpu.matmul %0, %1, %cst {dimension_numbers = #tpu.dot_dimension_numbers<[1], [0], [0], [1], [0, 0, 1, 1], [], []>} : vector<16x32xbf16>, vector<32x128xbf16>, vector<16x128xf32> -> vector<16x128xf32>
    %c0_3 = arith.constant 0 : index
    %c0_4 = arith.constant 0 : index
    %3 = vector.load %arg3[%c0_3, %c0_4] : memref<1x128xf32, #tpu.memory_space<vmem>>, vector<1x128xf32>
    %4 = vector.broadcast %3 : vector<1x128xf32> to vector<16x128xf32>
    %5 = arith.addf %2, %4 : vector<16x128xf32>
    %c0_5 = arith.constant 0 : index
    %c0_6 = arith.constant 0 : index
    %6 = vector.load %arg4[%c0_5, %c0_6] : memref<16x128xf32, #tpu.memory_space<vmem>>, vector<16x128xf32>
    tpu.vector_store %arg4[%c0_5, %c0_6], %5 {strides = array<i32>} : memref<16x128xf32, #tpu.memory_space<vmem>>, vector<16x128xf32>,
    return
  }
  func.func @transform_0(%arg0: i32) -> (i32, i32) {
    %c0_i32 = arith.constant 0 : i32
    %c0_i32_0 = arith.constant 0 : i32
    return %arg0, %c0_i32 : i32, i32
  }
  func.func @transform_1(%arg0: i32) -> (i32, i32) {
    %c0_i32 = arith.constant 0 : i32
    %c0_i32_0 = arith.constant 0 : i32
    %c0_i32_1 = arith.constant 0 : i32
    return %c0_i32, %c0_i32_0 : i32, i32
  }
  func.func @transform_2(%arg0: i32) -> (i32, i32) {
    %c0_i32 = arith.constant 0 : i32
    %c0_i32_0 = arith.constant 0 : i32
    %c0_i32_1 = arith.constant 0 : i32
    return %c0_i32, %c0_i32_0 : i32, i32
  }
  func.func @transform_3(%arg0: i32) -> (i32, i32) {
    %c0_i32 = arith.constant 0 : i32
    %c0_i32_0 = arith.constant 0 : i32
    return %arg0, %c0_i32 : i32, i32
  }
}

module attributes {stable_mosaic.version = 11 : i64} {
  func.func @_linear_kernel(%arg0: i32, %arg1: memref<16x32xbf16, #tpu.memory_space<vmem>>, %arg2: memref<32x128xbf16, #tpu.memory_space<vmem>>, %arg3: memref<1x128xf32, #tpu.memory_space<vmem>>, %arg4: memref<16x128xf32, #tpu.memory_space<vmem>>) attributes {dimension_semantics = [#tpu.dimension_semantics<parallel>], iteration_bounds = array<i64: 1>, scalar_prefetch = 0 : i64, scratch_operands = 0 : i64, tpu.core_type = #tpu.core_type<tc>, window_params = [{transform_indices = @transform_0, window_bounds = array<i64: 16, 32>}, {pipeline_mode = #tpu.pipeline_mode<synchronous>, transform_indices = @transform_1, window_bounds = array<i64: 32, 128>}, {pipeline_mode = #tpu.pipeline_mode<synchronous>, transform_indices = @transform_2, window_bounds = array<i64: 1, 128>}, {transform_indices = @transform_3, window_bounds = array<i64: 16, 128>}]} {
    %c0 = arith.constant 0 : index
    %c0_0 = arith.constant 0 : index
    %0 = vector.load %arg1[%c0, %c0_0] : memref<16x32xbf16, #tpu.memory_space<vmem>>, vector<16x32xbf16>
    %c0_1 = arith.constant 0 : index
    %c0_2 = arith.constant 0 : index
    %1 = vector.load %arg2[%c0_1, %c0_2] : memref<32x128xbf16, #tpu.memory_space<vmem>>, vector<32x128xbf16>
    %cst = arith.constant dense<0.000000e+00> : vector<16x128xf32>
    %2 = tpu.matmul %0, %1, %cst {dimension_numbers = #tpu.dot_dimension_numbers<[1], [0], [0], [1], [0, 0, 1, 1], [], []>} : vector<16x32xbf16>, vector<32x128xbf16>, vector<16x128xf32> -> vector<16x128xf32>
    %c0_3 = arith.constant 0 : index
    %c0_4 = arith.constant 0 : index
    %3 = vector.load %arg3[%c0_3, %c0_4] : memref<1x128xf32, #tpu.memory_space<vmem>>, vector<1x128xf32>
    %4 = vector.broadcast %3 : vector<1x128xf32> to vector<16x128xf32>
    %5 = arith.addf %2, %4 : vector<16x128xf32>
    %c0_5 = arith.constant 0 : index
    %c0_6 = arith.constant 0 : index
    %6 = vector.load %arg4[%c0_5, %c0_6] : memref<16x128xf32, #tpu.memory_space<vmem>>, vector<16x128xf32>
    tpu.vector_store %arg4[%c0_5, %c0_6], %5 {strides = array<i32>} : memref<16x128xf32, #tpu.memory_space<vmem>>, vector<16x128xf32>,
    return
  }
  func.func @transform_0(%arg0: i32) -> (i32, i32) {
    %c0_i32 = arith.constant 0 : i32
    %c0_i32_0 = arith.constant 0 : i32
    return %arg0, %c0_i32 : i32, i32
  }
  func.func @transform_1(%arg0: i32) -> (i32, i32) {
    %c0_i32 = arith.constant 0 : i32
    %c0_i32_0 = arith.constant 0 : i32
    %c0_i32_1 = arith.constant 0 : i32
    return %c0_i32, %c0_i32_0 : i32, i32
  }
  func.func @transform_2(%arg0: i32) -> (i32, i32) {
    %c0_i32 = arith.constant 0 : i32
    %c0_i32_0 = arith.constant 0 : i32
    %c0_i32_1 = arith.constant 0 : i32
    return %c0_i32, %c0_i32_0 : i32, i32
  }
  func.func @transform_3(%arg0: i32) -> (i32, i32) {
    %c0_i32 = arith.constant 0 : i32
    %c0_i32_0 = arith.constant 0 : i32
    return %arg0, %c0_i32 : i32, i32
  }
}

</mosaic_0001>

<llo_original>
// kernel: _forward.1
$region0: #{_forward.1}
  #allocation0 [shape = 'u32[]', space=smem, size = 0x4, offset = 0x4, fixed_abs, tag = 'smem constant byte address 0x4 - core index']
  #allocation1 [shape = 'u32[144,128]{1,0:T(1,128)}', space=vmem, size = 0x12000, scoped, tag = 'internal scratch']
  %s0 = inlined_call_operand.vmem [shape: bf16[2,32], index: 0, kind: input, shape index: {}]
  %s1 = inlined_call_operand.hbm [shape: bf16[32,128], index: 1, kind: input, shape index: {}]
  %s2 = inlined_call_operand.vmem [shape: f32[1,128], index: 2, kind: input, shape index: {}]
  %s3 = inlined_call_operand.hbm [shape: f32[2,128], index: 3, kind: output, shape index: {}]
  %s4 = sld [smem:[#allocation0]]
  $region26: #{_forward.1} parent=0
    _
  %s6 = ssub.s32 1, %s4
  %s7 = scalar_select 0, %s6, %s4
  $region1: #{_forward.1} parent=0
    #allocation2 [shape = 'u8[8192]{0}', space=vmem, size = 0x2000, scoped, tag = 'input window, operand 1, single buffered']
    #allocation3 [shape = 's32[1]{0}', space=sflag, size = 0x4, scoped, tag = 'scoped memory for _forward.1']
    #allocation4 [shape = 's32[1]{0}', space=sflag, size = 0x4, scoped, tag = 'scoped memory for _forward.1']
    #allocation5 [shape = 'u8[8192]{0}', space=vmem, size = 0x2000, scoped, tag = 'output window, operand 0, single buffered']
    %8 = vsyncpa [#allocation3], 0
    %9 = vsyncpa [#allocation4], 0
    // Predicated region
    $region2: #{_forward.1} parent=1 // pred_check
      _
    $region3: #{_forward.1} parent=1 // pred_check_branch
      %11 = sbr.rel (0) target = $region5
    $region4: #{_forward.1} parent=1 // pred_region
      _
    $region5: #{_forward.1} parent=1 // pred_fallthru
      _
    // Predicated region
    $region6: #{_forward.1} parent=1 // pred_check
      _
    $region7: #{_forward.1} parent=1 // pred_check_branch
      %13 = sbr.rel (0) target = $region9
    $region8: #{_forward.1} parent=1 // pred_region
      %s15 = ssub.s32 256, 256
      %16 = vsyncadd [#allocation3], %s15
      %s17 = sshll.u32 [#allocation2], 4
      %s18 = int_to_ptr.vmem [resolvable:$true] %s17
      %23 = dma.hbm_to_vmem [thread:$0]  %s1, 256, %s18, [#allocation3], 64, 64, 4
    $region9: #{_forward.1} parent=1 // pred_fallthru
      _
    // Predicated region
    $region10: #{_forward.1} parent=1 // pred_check
      _
    $region11: #{_forward.1} parent=1 // pred_check_branch
      %25 = sbr.rel (0) target = $region13
    $region12: #{_forward.1} parent=1 // pred_region
      _
    $region13: #{_forward.1} parent=1 // pred_fallthru
      _
    // Predicated region
    $region14: #{_forward.1} parent=1 // pred_check
      _
    $region15: #{_forward.1} parent=1 // pred_check_branch
      %27 = sbr.rel (0) target = $region17
    $region16: #{_forward.1} parent=1 // pred_region
      %28 = dma.done [#allocation3], 256
    $region17: #{_forward.1} parent=1 // pred_fallthru
      _
    %v30 = vld [vmem:[%s0] sm:$0x1]
    %v31 = vld [vmem:[%s0 + $0x1] sm:$0x1]
    %v32 = vld [vmem:[%s0 + $0x2] sm:$0x1]
    %v33 = vld [vmem:[%s0 + $0x3] sm:$0x1]
    %v34 = vld [vmem:[%s0 + $0x4] sm:$0x1]
    %v35 = vld [vmem:[%s0 + $0x5] sm:$0x1]
    %v36 = vld [vmem:[%s0 + $0x6] sm:$0x1]
    %v37 = vld [vmem:[%s0 + $0x7] sm:$0x1]
    %v38 = vld [vmem:[#allocation2] sm:$0xf]
    %v39 = vld [vmem:[#allocation2 + $0x4] sm:$0xf]
    %v40 = vld [vmem:[#allocation2 + $0x8] sm:$0xf]
    %v41 = vld [vmem:[#allocation2 + $0xc] sm:$0xf]
    %v42 = vld [vmem:[%s2] sm:$0x1]
    %v44 = vlaneseq
    %v45 = vshrl.u32 %v44, 7
    %v46 = vsub.s32 0, %v45
    %v47 = vrot.slane %v42, %v46
    %v57 = vcombine.low %v30, %v31
    %v58 = vcombine.low %v32, %v33
    %v59 = vcombine.low %v34, %v35
    %v60 = vcombine.low %v36, %v37
    %v62 = vunpack.c.l.s4 1966171168
    %v63 = vunpack.c.0.s8 %v62
    %v64 = vlaneseq
    %v65 = vshrl.u32 %v64, 7
    %v66 = vsub.s32 %v63, %v65
    %v67 = vrot.slane %v57, %v66
    %v69 = vunpack.c.l.s4 1966171168
    %v70 = vunpack.c.0.s8 %v69
    %v71 = vlaneseq
    %v72 = vshrl.u32 %v71, 7
    %v73 = vsub.s32 %v70, %v72
    %v74 = vrot.slane %v58, %v73
    %v76 = vunpack.c.l.s4 1966171168
    %v77 = vunpack.c.0.s8 %v76
    %v78 = vlaneseq
    %v79 = vshrl.u32 %v78, 7
    %v80 = vsub.s32 %v77, %v79
    %v81 = vrot.slane %v59, %v80
    %v83 = vunpack.c.l.s4 1966171168
    %v84 = vunpack.c.0.s8 %v83
    %v85 = vlaneseq
    %v86 = vshrl.u32 %v85, 7
    %v87 = vsub.s32 %v84, %v86
    %v88 = vrot.slane %v60, %v87
    %v89 = vcombine.low %v67, %v74
    %v90 = vcombine.low %v81, %v88
    %v92 = vunpack.c.l.s4 1966171168
    %v93 = vunpack.c.0.s8 %v92
    %v94 = vlaneseq
    %v95 = vshrl.u32 %v94, 7
    %v96 = vsub.s32 %v93, %v95
    %v97 = vrot.slane %v89, %v96
    %v99 = vunpack.c.l.s4 1966171168
    %v100 = vunpack.c.0.s8 %v99
    %v101 = vlaneseq
    %v102 = vshrl.u32 %v101, 7
    %v103 = vsub.s32 %v100, %v102
    %v104 = vrot.slane %v90, %v103
    %v105 = vcombine.low %v97, %v104
    %v110 = vunpack.c.l.b16 %v38
    %v111 = vunpack.c.l.b16 %v39
    %v112 = vunpack.c.l.b16 %v40
    %v113 = vunpack.c.l.b16 %v41
    %v114 = vpack.c.b16 %v111, %v110
    %v115 = vpack.c.b16 %v113, %v112
    %vm118 = vcmask 261120
    %v120 = vsel %vm118, %v105, 0
    %122 = vmatprep.subr.bf16.mxu0 0
    %123 = vmatpush1.bf16.msra.mxu0 0
    %124 = vmatprep.subr.bf16.mxu0 0
    %125 = vmatpush1.bf16.msra.mxu0 0
    %126 = vmatprep.subr.bf16.mxu0 0
    %127 = vmatpush1.bf16.msra.mxu0 0
    %128 = vmatprep.subr.bf16.mxu0 0
    %129 = vmatpush1.bf16.msra.mxu0 0
    %130 = vmatprep.subr.bf16.mxu0 0
    %131 = vmatpush1.bf16.msra.mxu0 0
    %132 = vmatprep.subr.bf16.mxu0 0
    %133 = vmatpush1.bf16.msra.mxu0 0
    %134 = vmatprep.subr.bf16.mxu0 0
    %135 = vmatpush1.bf16.msra.mxu0 %v115
    %136 = vmatprep.subr.bf16.mxu0 0
    %137 = vmatpush1.bf16.msra.mxu0 %v114
    %138 = vmatprep.subr.bf16.mxu0 0
    %139 = vmatpush2.bf16.msra.mxu0 0
    %140 = vmatprep.subr.bf16.mxu0 0
    %141 = vmatpush2.bf16.msra.mxu0 0
    %142 = vmatprep.subr.bf16.mxu0 0
    %143 = vmatpush2.bf16.msra.mxu0 0
    %144 = vmatprep.subr.bf16.mxu0 0
    %145 = vmatpush2.bf16.msra.mxu0 0
    %146 = vmatprep.subr.bf16.mxu0 0
    %147 = vmatpush2.bf16.msra.mxu0 0
    %148 = vmatprep.subr.bf16.mxu0 0
    %149 = vmatpush2.bf16.msra.mxu0 0
    %150 = vmatprep.subr.bf16.mxu0 0
    %151 = vmatpush2.bf16.msra.mxu0 0
    %152 = vmatprep.subr.bf16.mxu0 0
    %153 = vmatpush2.bf16.msra.mxu0 0
    %154 = vmatprep.mubr.bf16.mxu0 0
    %155 = vmatmul.mubr.bf16.gmra.mxu0 %v120
    %v156 = vpop.f32.mrf.mxu0
    %v157 = vadd.f32 %v47, %v156
    %v158 = vpop.f32.mrf.mxu0
    %v159 = vpop.f32.mrf.mxu0
    %v160 = vadd.f32 %v47, %v159
    %v161 = vpop.f32.mrf.mxu0
    %162 = vdwg.mxu0
    %163 = vst [vmem:[#allocation5] sm:$0xff] %v157
    %164 = vst [vmem:[#allocation5 + $0x8] sm:$0xff] %v160
    // Predicated region
    $region18: #{_forward.1} parent=1 // pred_check
      _
    $region19: #{_forward.1} parent=1 // pred_check_branch
      %166 = sbr.rel (0) target = $region21
    $region20: #{_forward.1} parent=1 // pred_region
      %s168 = ssub.s32 256, 32
      %169 = vsyncadd [#allocation4], %s168
      %s170 = sshll.u32 [#allocation5], 4
      %s171 = int_to_ptr.vmem [resolvable:$true] %s170
      %176 = dma.vmem_to_hbm [thread:$0]  %s171, 32, %s3, [#allocation4], 32, 32, 2
    $region21: #{_forward.1} parent=1 // pred_fallthru
      _
    // Predicated region
    $region22: #{_forward.1} parent=1 // pred_check
      _
    $region23: #{_forward.1} parent=1 // pred_check_branch
      %178 = sbr.rel (0) target = $region25
    $region24: #{_forward.1} parent=1 // pred_region
      %179 = dma.done [#allocation4], 256
    $region25: #{_forward.1} parent=1 // pred_fallthru
      _
    %180 = vsyncpa [#allocation3], 1
    %181 = vsyncpa [#allocation4], 1

// kernel: _forward.1
$region0: #{_forward.1}
  #allocation0 [shape = 'u32[]', space=smem, size = 0x4, offset = 0x4, fixed_abs, tag = 'smem constant byte address 0x4 - core index']
  #allocation1 [shape = 'u32[144,128]{1,0:T(1,128)}', space=vmem, size = 0x12000, scoped, tag = 'internal scratch']
  %s0 = inlined_call_operand.vmem [shape: bf16[2,32], index: 0, kind: input, shape index: {}]
  %s1 = inlined_call_operand.hbm [shape: bf16[32,128], index: 1, kind: input, shape index: {}]
  %s2 = inlined_call_operand.vmem [shape: f32[1,128], index: 2, kind: input, shape index: {}]
  %s3 = inlined_call_operand.hbm [shape: f32[2,128], index: 3, kind: output, shape index: {}]
  %s4 = sld [smem:[#allocation0]]
  $region26: #{_forward.1} parent=0
    _
  %s6 = ssub.s32 1, %s4
  %s7 = scalar_select 0, %s6, %s4
  $region1: #{_forward.1} parent=0
    #allocation2 [shape = 'u8[8192]{0}', space=vmem, size = 0x2000, scoped, tag = 'input window, operand 1, single buffered']
    #allocation3 [shape = 's32[1]{0}', space=sflag, size = 0x4, scoped, tag = 'scoped memory for _forward.1']
    #allocation4 [shape = 's32[1]{0}', space=sflag, size = 0x4, scoped, tag = 'scoped memory for _forward.1']
    #allocation5 [shape = 'u8[8192]{0}', space=vmem, size = 0x2000, scoped, tag = 'output window, operand 0, single buffered']
    %8 = vsyncpa [#allocation3], 0
    %9 = vsyncpa [#allocation4], 0
    // Predicated region
    $region2: #{_forward.1} parent=1 // pred_check
      _
    $region3: #{_forward.1} parent=1 // pred_check_branch
      %11 = sbr.rel (0) target = $region5
    $region4: #{_forward.1} parent=1 // pred_region
      _
    $region5: #{_forward.1} parent=1 // pred_fallthru
      _
    // Predicated region
    $region6: #{_forward.1} parent=1 // pred_check
      _
    $region7: #{_forward.1} parent=1 // pred_check_branch
      %13 = sbr.rel (0) target = $region9
    $region8: #{_forward.1} parent=1 // pred_region
      %s15 = ssub.s32 256, 256
      %16 = vsyncadd [#allocation3], %s15
      %s17 = sshll.u32 [#allocation2], 4
      %s18 = int_to_ptr.vmem [resolvable:$true] %s17
      %23 = dma.hbm_to_vmem [thread:$0]  %s1, 256, %s18, [#allocation3], 64, 64, 4
    $region9: #{_forward.1} parent=1 // pred_fallthru
      _
    // Predicated region
    $region10: #{_forward.1} parent=1 // pred_check
      _
    $region11: #{_forward.1} parent=1 // pred_check_branch
      %25 = sbr.rel (0) target = $region13
    $region12: #{_forward.1} parent=1 // pred_region
      _
    $region13: #{_forward.1} parent=1 // pred_fallthru
      _
    // Predicated region
    $region14: #{_forward.1} parent=1 // pred_check
      _
    $region15: #{_forward.1} parent=1 // pred_check_branch
      %27 = sbr.rel (0) target = $region17
    $region16: #{_forward.1} parent=1 // pred_region
      %28 = dma.done [#allocation3], 256
    $region17: #{_forward.1} parent=1 // pred_fallthru
      _
    %v30 = vld [vmem:[%s0] sm:$0x1]
    %v31 = vld [vmem:[%s0 + $0x1] sm:$0x1]
    %v32 = vld [vmem:[%s0 + $0x2] sm:$0x1]
    %v33 = vld [vmem:[%s0 + $0x3] sm:$0x1]
    %v34 = vld [vmem:[%s0 + $0x4] sm:$0x1]
    %v35 = vld [vmem:[%s0 + $0x5] sm:$0x1]
    %v36 = vld [vmem:[%s0 + $0x6] sm:$0x1]
    %v37 = vld [vmem:[%s0 + $0x7] sm:$0x1]
    %v38 = vld [vmem:[#allocation2] sm:$0xf]
    %v39 = vld [vmem:[#allocation2 + $0x4] sm:$0xf]
    %v40 = vld [vmem:[#allocation2 + $0x8] sm:$0xf]
    %v41 = vld [vmem:[#allocation2 + $0xc] sm:$0xf]
    %v42 = vld [vmem:[%s2] sm:$0x1]
    %v44 = vlaneseq
    %v45 = vshrl.u32 %v44, 7
    %v46 = vsub.s32 0, %v45
    %v47 = vrot.slane %v42, %v46
    %v57 = vcombine.low %v30, %v31
    %v58 = vcombine.low %v32, %v33
    %v59 = vcombine.low %v34, %v35
    %v60 = vcombine.low %v36, %v37
    %v62 = vunpack.c.l.s4 1966171168
    %v63 = vunpack.c.0.s8 %v62
    %v64 = vlaneseq
    %v65 = vshrl.u32 %v64, 7
    %v66 = vsub.s32 %v63, %v65
    %v67 = vrot.slane %v57, %v66
    %v69 = vunpack.c.l.s4 1966171168
    %v70 = vunpack.c.0.s8 %v69
    %v71 = vlaneseq
    %v72 = vshrl.u32 %v71, 7
    %v73 = vsub.s32 %v70, %v72
    %v74 = vrot.slane %v58, %v73
    %v76 = vunpack.c.l.s4 1966171168
    %v77 = vunpack.c.0.s8 %v76
    %v78 = vlaneseq
    %v79 = vshrl.u32 %v78, 7
    %v80 = vsub.s32 %v77, %v79
    %v81 = vrot.slane %v59, %v80
    %v83 = vunpack.c.l.s4 1966171168
    %v84 = vunpack.c.0.s8 %v83
    %v85 = vlaneseq
    %v86 = vshrl.u32 %v85, 7
    %v87 = vsub.s32 %v84, %v86
    %v88 = vrot.slane %v60, %v87
    %v89 = vcombine.low %v67, %v74
    %v90 = vcombine.low %v81, %v88
    %v92 = vunpack.c.l.s4 1966171168
    %v93 = vunpack.c.0.s8 %v92
    %v94 = vlaneseq
    %v95 = vshrl.u32 %v94, 7
    %v96 = vsub.s32 %v93, %v95
    %v97 = vrot.slane %v89, %v96
    %v99 = vunpack.c.l.s4 1966171168
    %v100 = vunpack.c.0.s8 %v99
    %v101 = vlaneseq
    %v102 = vshrl.u32 %v101, 7
    %v103 = vsub.s32 %v100, %v102
    %v104 = vrot.slane %v90, %v103
    %v105 = vcombine.low %v97, %v104
    %v110 = vunpack.c.l.b16 %v38
    %v111 = vunpack.c.l.b16 %v39
    %v112 = vunpack.c.l.b16 %v40
    %v113 = vunpack.c.l.b16 %v41
    %v114 = vpack.c.b16 %v111, %v110
    %v115 = vpack.c.b16 %v113, %v112
    %vm118 = vcmask 261120
    %v120 = vsel %vm118, %v105, 0
    %122 = vmatprep.subr.bf16.mxu0 0
    %123 = vmatpush1.bf16.msra.mxu0 0
    %124 = vmatprep.subr.bf16.mxu0 0
    %125 = vmatpush1.bf16.msra.mxu0 0
    %126 = vmatprep.subr.bf16.mxu0 0
    %127 = vmatpush1.bf16.msra.mxu0 0
    %128 = vmatprep.subr.bf16.mxu0 0
    %129 = vmatpush1.bf16.msra.mxu0 0
    %130 = vmatprep.subr.bf16.mxu0 0
    %131 = vmatpush1.bf16.msra.mxu0 0
    %132 = vmatprep.subr.bf16.mxu0 0
    %133 = vmatpush1.bf16.msra.mxu0 0
    %134 = vmatprep.subr.bf16.mxu0 0
    %135 = vmatpush1.bf16.msra.mxu0 %v115
    %136 = vmatprep.subr.bf16.mxu0 0
    %137 = vmatpush1.bf16.msra.mxu0 %v114
    %138 = vmatprep.subr.bf16.mxu0 0
    %139 = vmatpush2.bf16.msra.mxu0 0
    %140 = vmatprep.subr.bf16.mxu0 0
    %141 = vmatpush2.bf16.msra.mxu0 0
    %142 = vmatprep.subr.bf16.mxu0 0
    %143 = vmatpush2.bf16.msra.mxu0 0
    %144 = vmatprep.subr.bf16.mxu0 0
    %145 = vmatpush2.bf16.msra.mxu0 0
    %146 = vmatprep.subr.bf16.mxu0 0
    %147 = vmatpush2.bf16.msra.mxu0 0
    %148 = vmatprep.subr.bf16.mxu0 0
    %149 = vmatpush2.bf16.msra.mxu0 0
    %150 = vmatprep.subr.bf16.mxu0 0
    %151 = vmatpush2.bf16.msra.mxu0 0
    %152 = vmatprep.subr.bf16.mxu0 0
    %153 = vmatpush2.bf16.msra.mxu0 0
    %154 = vmatprep.mubr.bf16.mxu0 0
    %155 = vmatmul.mubr.bf16.gmra.mxu0 %v120
    %v156 = vpop.f32.mrf.mxu0
    %v157 = vadd.f32 %v47, %v156
    %v158 = vpop.f32.mrf.mxu0
    %v159 = vpop.f32.mrf.mxu0
    %v160 = vadd.f32 %v47, %v159
    %v161 = vpop.f32.mrf.mxu0
    %162 = vdwg.mxu0
    %163 = vst [vmem:[#allocation5] sm:$0xff] %v157
    %164 = vst [vmem:[#allocation5 + $0x8] sm:$0xff] %v160
    // Predicated region
    $region18: #{_forward.1} parent=1 // pred_check
      _
    $region19: #{_forward.1} parent=1 // pred_check_branch
      %166 = sbr.rel (0) target = $region21
    $region20: #{_forward.1} parent=1 // pred_region
      %s168 = ssub.s32 256, 32
      %169 = vsyncadd [#allocation4], %s168
      %s170 = sshll.u32 [#allocation5], 4
      %s171 = int_to_ptr.vmem [resolvable:$true] %s170
      %176 = dma.vmem_to_hbm [thread:$0]  %s171, 32, %s3, [#allocation4], 32, 32, 2
    $region21: #{_forward.1} parent=1 // pred_fallthru
      _
    // Predicated region
    $region22: #{_forward.1} parent=1 // pred_check
      _
    $region23: #{_forward.1} parent=1 // pred_check_branch
      %178 = sbr.rel (0) target = $region25
    $region24: #{_forward.1} parent=1 // pred_region
      %179 = dma.done [#allocation4], 256
    $region25: #{_forward.1} parent=1 // pred_fallthru
      _
    %180 = vsyncpa [#allocation3], 1
    %181 = vsyncpa [#allocation4], 1

</llo_original>
